<compile_context>
chip_gen: v5e
topology: v5e:2x2
jax: 0.10.0
libtpu: 0.0.40
codegen_flags: <defaults>
</compile_context>

<pallas_src>
import functools

import jax
import jax.numpy as jnp
from jax.experimental import pallas as pl
from jax.experimental.pallas import tpu as pltpu


def _hbm_copy_kernel(x_hbm, o_hbm, sems, *, num_chunks):
    """Pure HBM -> HBM DMA copy: no VMEM staging, no vld/vst, no grid steps."""
    copies = [
        pltpu.make_async_copy(x_hbm.at[c], o_hbm.at[c], sems.at[c])
        for c in range(num_chunks)
    ]
    for cp in copies:       # issue all DMAs (one per chunk / DMA engine)
        cp.start()
    for cp in copies:       # then block on completion
        cp.wait()


def _pick_num_chunks(n, itemsize):
    """Small copies: one DMA.  Large copies: a few DMAs to use multiple engines."""
    nbytes = n * itemsize
    if nbytes < (4 << 20):
        return 1
    for k in (8, 4, 2):
        if n % k == 0:
            return k
    return 1


@jax.jit
def model_forward(x):
    """Identity forward pass (PyTorch Model.forward body is `pass`)."""
    n = x.size
    if n == 0:
        return x  # degenerate input: nothing to copy

    itemsize = jnp.dtype(x.dtype).itemsize
    num_chunks = _pick_num_chunks(n, itemsize)
    # Zero-cost contiguous reshape so each chunk is a flat, dense slab.
    slab = x.reshape(num_chunks, n // num_chunks)

    out_slab = pl.pallas_call(
        functools.partial(_hbm_copy_kernel, num_chunks=num_chunks),
        out_shape=jax.ShapeDtypeStruct(slab.shape, slab.dtype),
        # Raw HBM refs: no auto-DMA, no VMEM double buffers, no (8,128) tiling.
        in_specs=[pl.BlockSpec(memory_space=pl.ANY)],
        out_specs=pl.BlockSpec(memory_space=pl.ANY),
        scratch_shapes=[pltpu.SemaphoreType.DMA((num_chunks,))],
        cost_estimate=pl.CostEstimate(
            flops=0,
            transcendentals=0,
            bytes_accessed=2 * n * itemsize,
        ),
    )(slab)

    return out_slab.reshape(x.shape)


if __name__ == "__main__":
    key = jax.random.PRNGKey(0)
    # Small NCHW input consistent with a conv-style module: (N=2, C=4, H=16, W=16)
    x = jax.random.normal(key, (2, 4, 16, 16), dtype=jnp.float32)

    y = model_forward(x)
    jax.block_until_ready(y)

    # Sanity check: exact identity semantics.
    assert y.shape == x.shape and y.dtype == x.dtype
    assert bool(jnp.all(y == x))

    print("KERNEL_OK")
</pallas_src>

<mosaic_0001>
module attributes {stable_mosaic.version = 11 : i64} {
  func.func @_hbm_copy_kernel(%arg0: memref<1x2048xf32, #tpu.memory_space<any>>, %arg1: memref<1x2048xf32, #tpu.memory_space<any>>, %arg2: memref<1x!tpu.dma_semaphore, #tpu.memory_space<semaphore_mem>>) attributes {dimension_semantics = [], scalar_prefetch = 0 : i64, scratch_operands = 1 : i64, tpu.core_type = #tpu.core_type<tc>} {
    %c0_i32 = arith.constant 0 : i32
    %c0_i32_0 = arith.constant 0 : i32
    %c0_i32_1 = arith.constant 0 : i32
    %c0_i32_2 = arith.constant 0 : i32
    %0 = tpu.memref_slice %arg0[%c0_i32, %c0_i32_2] : memref<1x2048xf32, #tpu.memory_space<any>> -> memref<1x2048xf32, #tpu.memory_space<any>>
    %1 = tpu.memref_squeeze %0 : memref<1x2048xf32, #tpu.memory_space<any>> -> memref<2048xf32, #tpu.memory_space<any>>
    %c0_i32_3 = arith.constant 0 : i32
    %2 = tpu.memref_slice %arg1[%c0_i32_0, %c0_i32_3] : memref<1x2048xf32, #tpu.memory_space<any>> -> memref<1x2048xf32, #tpu.memory_space<any>>
    %3 = tpu.memref_squeeze %2 : memref<1x2048xf32, #tpu.memory_space<any>> -> memref<2048xf32, #tpu.memory_space<any>>
    %4 = tpu.memref_slice %arg2[%c0_i32_1] : memref<1x!tpu.dma_semaphore, #tpu.memory_space<semaphore_mem>> -> memref<1x!tpu.dma_semaphore, #tpu.memory_space<semaphore_mem>>
    %5 = tpu.memref_squeeze %4 : memref<1x!tpu.dma_semaphore, #tpu.memory_space<semaphore_mem>> -> memref<!tpu.dma_semaphore, #tpu.memory_space<semaphore_mem>>
    tpu.enqueue_dma source(%1 : memref<2048xf32, #tpu.memory_space<any>>) target(%3 : memref<2048xf32, #tpu.memory_space<any>>) target_semaphore(%5 : memref<!tpu.dma_semaphore, #tpu.memory_space<semaphore_mem>>)
    %c0_i32_4 = arith.constant 0 : i32
    %c0_i32_5 = arith.constant 0 : i32
    %c0_i32_6 = arith.constant 0 : i32
    %c0_i32_7 = arith.constant 0 : i32
    %6 = tpu.memref_slice %arg0[%c0_i32_4, %c0_i32_7] : memref<1x2048xf32, #tpu.memory_space<any>> -> memref<1x2048xf32, #tpu.memory_space<any>>
    %7 = tpu.memref_squeeze %6 : memref<1x2048xf32, #tpu.memory_space<any>> -> memref<2048xf32, #tpu.memory_space<any>>
    %c0_i32_8 = arith.constant 0 : i32
    %8 = tpu.memref_slice %arg1[%c0_i32_5, %c0_i32_8] : memref<1x2048xf32, #tpu.memory_space<any>> -> memref<1x2048xf32, #tpu.memory_space<any>>
    %9 = tpu.memref_squeeze %8 : memref<1x2048xf32, #tpu.memory_space<any>> -> memref<2048xf32, #tpu.memory_space<any>>
    %10 = tpu.memref_slice %arg2[%c0_i32_6] : memref<1x!tpu.dma_semaphore, #tpu.memory_space<semaphore_mem>> -> memref<1x!tpu.dma_semaphore, #tpu.memory_space<semaphore_mem>>
    %11 = tpu.memref_squeeze %10 : memref<1x!tpu.dma_semaphore, #tpu.memory_space<semaphore_mem>> -> memref<!tpu.dma_semaphore, #tpu.memory_space<semaphore_mem>>
    tpu.wait_dma2 semaphore(%11 : memref<!tpu.dma_semaphore, #tpu.memory_space<semaphore_mem>>) src(%7 : memref<2048xf32, #tpu.memory_space<any>>) dst(%9 : memref<2048xf32, #tpu.memory_space<any>>)
    return
  }
}

</mosaic_0001>

<llo_original>
// kernel: model_forward.1
$region0: #{model_forward.1}
  #allocation0 [shape = 'u32[]', space=smem, size = 0x4, offset = 0x4, fixed_abs, tag = 'smem constant byte address 0x4 - core index']
  #allocation1 [shape = 'u32[72,128]{1,0:T(1,128)}', space=vmem, size = 0x9000, scoped, tag = 'internal scratch']
  #allocation2 [shape = 's32[1]{0}', space=sflag, size = 0x4, scoped, tag = 'scratch operand']
  #allocation3 [shape = 's32[]', space=sflag, size = 0x4, offset = 0, fixed_abs, tag = 'sflag constant byte address 0x0 - dummy sync flag']
  %s0 = inlined_call_operand.vmem [shape: f32[1,2048], index: 0, kind: input, shape index: {}]
  %s1 = inlined_call_operand.vmem [shape: f32[1,2048], index: 1, kind: output, shape index: {}]
  %s2 = sld [smem:[#allocation0]]
  $region21: #{model_forward.1} parent=0
    _
  %s4 = ssub.s32 1, %s2
  %s5 = scalar_select 0, %s4, %s2
  // Predicated region
  $region2: #{model_forward.1} parent=0 // pred_check
    _
  $region3: #{model_forward.1} parent=0 // pred_check_branch
    %7 = sbr.rel (0) target = $region5
  $region4: #{model_forward.1} parent=0 // pred_region
    loop: start=0, step=1, limit=1
    $region6: #{model_forward.1} parent=4 // loop_pre_header
      _
    $region7: #{model_forward.1} parent=4 // loop_header
      %s9 = sphi 0, %s13
      %p10 = scmp.ge.s32.totalorder %s9, 1
      %s14 = sphi %s0, %s0
      %s15 = sphi %s1, %s1
    $region8: #{model_forward.1} parent=4 // loop_header_branch
      %12 = sbr.rel (%p10) target = $region12
    $region9: #{model_forward.1} parent=4 // loop_body
      %v16 = vld [vmem:[%s14] sm:$0xff]
      %17 = vst [vmem:[%s15] sm:$0xff] %v16
      %v18 = vld [vmem:[%s14 + $0x8] sm:$0xff]
      %19 = vst [vmem:[%s15 + $0x8] sm:$0xff] %v18
    $region10: #{model_forward.1} parent=4 // loop_footer
      %s13 = sadd.s32 1, %s9
    $region11: #{model_forward.1} parent=4 // loop_footer_branch
      %8 = sbr.rel target = $region7
    $region12: #{model_forward.1} parent=4 // loop_exit
      _
  $region5: #{model_forward.1} parent=0 // pred_fallthru
    _
  // Predicated region
  $region13: #{model_forward.1} parent=0 // pred_check
    _
  $region14: #{model_forward.1} parent=0 // pred_check_branch
    %21 = sbr.rel target = $region16
  $region15: #{model_forward.1} parent=0 // pred_region
    _
  $region16: #{model_forward.1} parent=0 // pred_fallthru
    _
  // Predicated region
  $region17: #{model_forward.1} parent=0 // pred_check
    _
  $region18: #{model_forward.1} parent=0 // pred_check_branch
    %24 = sbr.rel (0) target = $region20
  $region19: #{model_forward.1} parent=0 // pred_region
    %25 = vsyncadd [#allocation2], 256
  $region20: #{model_forward.1} parent=0 // pred_fallthru
    _
  %27 = dma.done [#allocation2], 256
  %28 = vsyncmov [#allocation2]
  %s29 = vpop.sfrf %28
  %p30 = scmp.eq.s32.totalorder %s29, 0
  %p31 = pneg %p30
  %33 = shalt.err (%p31)

</llo_original>
